<compile_context>
chip_gen: v7x
topology: tpu7x:2x2x1
jax: 0.10.0
libtpu: 0.0.40
codegen_flags: <defaults>
</compile_context>

<pallas_src>
import functools

import numpy as np
import jax
import jax.numpy as jnp
from jax.experimental import pallas as pl
from jax.experimental.pallas import tpu as pltpu

KH, KW = 3, 3
CIN, COUT = 3, 64
K_TAPS = KH * KW * CIN          # 27 real contraction rows
K_PANEL = K_TAPS + 1            # + ones-row that carries the bias


def _round_up(x, m):
    return ((x + m - 1) // m) * m


def _pick_pixel_tile(num_pixels, width, batch):
    """Pixel-tile (lane) width: multiple of 128, >= halo (2W+2), <= 8192."""
    min_tp = _round_up(max(2 * width + 2, 128), 128)
    cap = 8192
    if batch == 1:
        # v7x has two TensorCores: make sure a batch-1 call still yields >= 2
        # grid steps so both cores get work (no effect on v5e / v6e).
        cap = min(cap, _round_up(max((num_pixels + 1) // 2, 128), 128))
    cap = max(cap, min_tp)
    # Prefer the largest tile <= cap that divides H*W exactly (no output
    # padding and no wrapper-side slice); otherwise pad the pixel axis.
    best = 0
    t = min_tp
    while t <= cap:
        if num_pixels % t == 0:
            best = t
        t += 128
    if best:
        return best
    return min(cap, max(min_tp, _round_up(num_pixels, 128)))


def _conv3x3_kernel(col_ref, gc_ref, gn_ref, w_ref, o_ref, *, width, tp, halo):
    """One (batch, pixel-tile) step.

    col_ref: (1, TP)  int32   output-column index per pixel (for border masks)
    gc_ref : (1, 3, TP)       flattened input, current tile
    gn_ref : (1, 3, TP)       flattened input, next tile (supplies the halo)
    w_ref  : (64, 28)         flattened weights + bias column (VMEM-resident)
    o_ref  : (1, 64, TP)      output tile, already in NCHW pixel order
    """
    cur = gc_ref[0]                                        # (3, TP)
    nxt = gn_ref[0]                                        # (3, TP)
    ext = jnp.concatenate([cur, nxt[:, :halo]], axis=-1)   # (3, TP + 2W + 2)

    col = col_ref[...]                                     # (1, TP) int32
    not_left = col != 0                                    # col 0: no "west" tap
    not_right = col != width - 1                           # col W-1: no "east" tap

    # Build the (28, TP) tap panel from 9 statically shifted copies (XLU work,
    # hidden under the output DMA) plus a ones-row for the bias.
    rows = []
    for kh in range(KH):
        for kw in range(KW):
            off = kh * width + kw
            tap = ext[:, off:off + tp]                     # (3, TP)
            if kw == 0:
                tap = jnp.where(not_left, tap, 0.0)
            elif kw == 2:
                tap = jnp.where(not_right, tap, 0.0)
            rows.append(tap)
    rows.append(jnp.ones((1, tp), dtype=ext.dtype))        # bias row
    panel = jnp.concatenate(rows, axis=0)                  # (28, TP)

    # Single fused MXU matmul per tile: (64, 28) @ (28, TP) (bias included).
    acc = jnp.dot(w_ref[...], panel, preferred_element_type=jnp.float32)
    o_ref[0] = acc.astype(o_ref.dtype)                     # lane-dense store


def conv_functional(x, weight, bias):
    """x: (N, 3, H, W) f32; weight: (64, 3, 3, 3); bias: (64,) -> (N, 64, H, W).

    Same math as F.conv2d(x, weight, bias, padding=1).
    """
    n, cin, h, w = x.shape
    assert cin == CIN and weight.shape == (COUT, CIN, KH, KW)
    p = h * w
    tp = _pick_pixel_tile(p, w, n)
    num_tiles = pl.cdiv(p, tp)
    p_pad = num_tiles * tp
    halo = 2 * w + 2

    # ---- XLA-side glue (cheap, ~30 B/px total; no materialized im2col) ----
    # Flattened height-padded input with a one-element lead so the tap of
    # output pixel p for kernel offset (kh, kw) is simply g[p + kh*W + kw];
    # the two wrapped columns per row are masked in-kernel.  The length covers
    # one extra TP block so the "t+1" halo BlockSpec is always in bounds.
    g_len = (num_tiles + 1) * tp
    x_flat = x.reshape(n, CIN, p)
    g = jnp.pad(x_flat, ((0, 0), (0, 0), (w + 1, g_len - p - w - 1)))
    # Output-column index per (padded) pixel -> left/right border masks.
    col = (jnp.arange(p_pad, dtype=jnp.int32) % w).reshape(1, p_pad)
    # (Cout, Cin, KH, KW) -> (Cout, 27) with k = (kh*3 + kw)*3 + cin, then the
    # bias appended as column 27 (matches the ones-row of the panel).
    w_flat = jnp.transpose(weight, (0, 2, 3, 1)).reshape(COUT, K_TAPS)
    w_panel = jnp.concatenate([w_flat, bias.reshape(COUT, 1)], axis=1)

    kernel = functools.partial(_conv3x3_kernel, width=w, tp=tp, halo=halo)

    out_flat = pl.pallas_call(
        kernel,
        out_shape=jax.ShapeDtypeStruct((n, COUT, p_pad), x.dtype),
        grid=(n, num_tiles),
        in_specs=[
            pl.BlockSpec((1, tp), lambda b, t: (0, t)),              # col idx
            pl.BlockSpec((1, CIN, tp), lambda b, t: (b, 0, t)),      # cur tile
            pl.BlockSpec((1, CIN, tp), lambda b, t: (b, 0, t + 1)),  # halo tile
            pl.BlockSpec((COUT, K_PANEL), lambda b, t: (0, 0)),      # weights
        ],
        out_specs=pl.BlockSpec((1, COUT, tp), lambda b, t: (b, 0, t)),
        compiler_params=pltpu.CompilerParams(
            dimension_semantics=("parallel", "parallel"),
            vmem_limit_bytes=48 * 1024 * 1024),
        cost_estimate=pl.CostEstimate(
            flops=2 * K_PANEL * COUT * n * p,
            transcendentals=0,
            bytes_accessed=4 * (n * CIN * p + COUT * K_PANEL + n * COUT * p)),
    )(col, g, g, w_panel)

    out = out_flat if p_pad == p else out_flat[:, :, :p]
    return out.reshape(n, COUT, h, w)   # free reshape: already NCHW order


if __name__ == "__main__":
    key = jax.random.PRNGKey(0)
    k_x, k_w, k_b = jax.random.split(key, 3)

    # Parameters matching the module's __init__ shapes (bias made nonzero so
    # the fused-bias path is actually exercised by the check).
    weight = jax.random.normal(k_w, (COUT, CIN, KH, KW), dtype=jnp.float32)
    bias = 0.1 * jax.random.normal(k_b, (COUT,), dtype=jnp.float32)

    # Small NCHW input consistent with the forward pass (Cin = 3).
    x = jax.random.normal(k_x, (2, CIN, 16, 16), dtype=jnp.float32)

    fwd = jax.jit(conv_functional)
    out = jax.block_until_ready(fwd(x, weight, bias))

    # Reference: XLA conv with the same NCHW / OIHW convention as PyTorch.
    ref = jax.lax.conv_general_dilated(
        x, weight, window_strides=(1, 1), padding=((1, 1), (1, 1)),
        dimension_numbers=("NCHW", "OIHW", "NCHW"),
    ) + bias.reshape(1, COUT, 1, 1)
    np.testing.assert_allclose(np.asarray(out), np.asarray(ref),
                               rtol=1e-4, atol=1e-4)

    print("KERNEL_OK")
</pallas_src>

<mosaic_0001>
module attributes {stable_mosaic.version = 11 : i64} {
  func.func @_conv3x3_kernel(%arg0: i32, %arg1: i32, %arg2: memref<1x256xi32, #tpu.memory_space<vmem>>, %arg3: memref<1x3x256xf32, #tpu.memory_space<vmem>>, %arg4: memref<1x3x256xf32, #tpu.memory_space<vmem>>, %arg5: memref<64x28xf32, #tpu.memory_space<vmem>>, %arg6: memref<1x64x256xf32, #tpu.memory_space<vmem>>) attributes {dimension_semantics = [#tpu.dimension_semantics<parallel>, #tpu.dimension_semantics<parallel>], iteration_bounds = array<i64: 2, 1>, scalar_prefetch = 0 : i64, scratch_operands = 0 : i64, tpu.core_type = #tpu.core_type<tc>, window_params = [{transform_indices = @transform_0, window_bounds = array<i64: 1, 256>}, {transform_indices = @transform_1, window_bounds = array<i64: 1, 3, 256>}, {transform_indices = @transform_2, window_bounds = array<i64: 1, 3, 256>}, {pipeline_mode = #tpu.pipeline_mode<synchronous>, transform_indices = @transform_3, window_bounds = array<i64: 64, 28>}, {transform_indices = @transform_4, window_bounds = array<i64: 1, 64, 256>}]} {
    %c0 = arith.constant 0 : index
    %c0_0 = arith.constant 0 : index
    %c0_1 = arith.constant 0 : index
    %0 = vector.load %arg3[%c0, %c0_0, %c0_1] : memref<1x3x256xf32, #tpu.memory_space<vmem>>, vector<1x3x256xf32>
    %1 = vector.shape_cast %0 : vector<1x3x256xf32> to vector<3x256xf32>
    %c0_2 = arith.constant 0 : index
    %c0_3 = arith.constant 0 : index
    %c0_4 = arith.constant 0 : index
    %2 = vector.load %arg4[%c0_2, %c0_3, %c0_4] : memref<1x3x256xf32, #tpu.memory_space<vmem>>, vector<1x3x256xf32>
    %3 = vector.shape_cast %2 : vector<1x3x256xf32> to vector<3x256xf32>
    %4 = vector.extract_strided_slice %3 {offsets = [0, 0], sizes = [3, 34], strides = [1, 1]} : vector<3x256xf32> to vector<3x34xf32>
    %5 = tpu.concatenate %1, %4 in 1 : vector<3x256xf32>, vector<3x34xf32> -> vector<3x290xf32>
    %c0_5 = arith.constant 0 : index
    %c0_6 = arith.constant 0 : index
    %6 = vector.load %arg2[%c0_5, %c0_6] : memref<1x256xi32, #tpu.memory_space<vmem>>, vector<1x256xi32>
    %c0_i32 = arith.constant 0 : i32
    %7 = vector.broadcast %c0_i32 : i32 to vector<1x256xi32>
    %8 = arith.cmpi ne, %6, %7 : vector<1x256xi32>
    %c15_i32 = arith.constant 15 : i32
    %9 = vector.broadcast %c15_i32 : i32 to vector<1x256xi32>
    %10 = arith.cmpi ne, %6, %9 : vector<1x256xi32>
    %11 = vector.extract_strided_slice %5 {offsets = [0, 0], sizes = [3, 256], strides = [1, 1]} : vector<3x290xf32> to vector<3x256xf32>
    %cst = arith.constant 0.000000e+00 : f32
    %12 = vector.shape_cast %8 : vector<1x256xi1> to vector<1x256xi1>
    %13 = vector.broadcast %12 : vector<1x256xi1> to vector<3x256xi1>
    %14 = vector.broadcast %cst : f32 to vector<3x256xf32>
    %15 = arith.select %13, %11, %14 : vector<3x256xi1>, vector<3x256xf32>
    %16 = vector.extract_strided_slice %5 {offsets = [0, 1], sizes = [3, 256], strides = [1, 1]} : vector<3x290xf32> to vector<3x256xf32>
    %17 = vector.extract_strided_slice %5 {offsets = [0, 2], sizes = [3, 256], strides = [1, 1]} : vector<3x290xf32> to vector<3x256xf32>
    %cst_7 = arith.constant 0.000000e+00 : f32
    %18 = vector.shape_cast %10 : vector<1x256xi1> to vector<1x256xi1>
    %19 = vector.broadcast %18 : vector<1x256xi1> to vector<3x256xi1>
    %20 = vector.broadcast %cst_7 : f32 to vector<3x256xf32>
    %21 = arith.select %19, %17, %20 : vector<3x256xi1>, vector<3x256xf32>
    %22 = vector.extract_strided_slice %5 {offsets = [0, 16], sizes = [3, 256], strides = [1, 1]} : vector<3x290xf32> to vector<3x256xf32>
    %cst_8 = arith.constant 0.000000e+00 : f32
    %23 = vector.shape_cast %8 : vector<1x256xi1> to vector<1x256xi1>
    %24 = vector.broadcast %23 : vector<1x256xi1> to vector<3x256xi1>
    %25 = vector.broadcast %cst_8 : f32 to vector<3x256xf32>
    %26 = arith.select %24, %22, %25 : vector<3x256xi1>, vector<3x256xf32>
    %27 = vector.extract_strided_slice %5 {offsets = [0, 17], sizes = [3, 256], strides = [1, 1]} : vector<3x290xf32> to vector<3x256xf32>
    %28 = vector.extract_strided_slice %5 {offsets = [0, 18], sizes = [3, 256], strides = [1, 1]} : vector<3x290xf32> to vector<3x256xf32>
    %cst_9 = arith.constant 0.000000e+00 : f32
    %29 = vector.shape_cast %10 : vector<1x256xi1> to vector<1x256xi1>
    %30 = vector.broadcast %29 : vector<1x256xi1> to vector<3x256xi1>
    %31 = vector.broadcast %cst_9 : f32 to vector<3x256xf32>
    %32 = arith.select %30, %28, %31 : vector<3x256xi1>, vector<3x256xf32>
    %33 = vector.extract_strided_slice %5 {offsets = [0, 32], sizes = [3, 256], strides = [1, 1]} : vector<3x290xf32> to vector<3x256xf32>
    %cst_10 = arith.constant 0.000000e+00 : f32
    %34 = vector.shape_cast %8 : vector<1x256xi1> to vector<1x256xi1>
    %35 = vector.broadcast %34 : vector<1x256xi1> to vector<3x256xi1>
    %36 = vector.broadcast %cst_10 : f32 to vector<3x256xf32>
    %37 = arith.select %35, %33, %36 : vector<3x256xi1>, vector<3x256xf32>
    %38 = vector.extract_strided_slice %5 {offsets = [0, 33], sizes = [3, 256], strides = [1, 1]} : vector<3x290xf32> to vector<3x256xf32>
    %39 = vector.extract_strided_slice %5 {offsets = [0, 34], sizes = [3, 256], strides = [1, 1]} : vector<3x290xf32> to vector<3x256xf32>
    %cst_11 = arith.constant 0.000000e+00 : f32
    %40 = vector.shape_cast %10 : vector<1x256xi1> to vector<1x256xi1>
    %41 = vector.broadcast %40 : vector<1x256xi1> to vector<3x256xi1>
    %42 = vector.broadcast %cst_11 : f32 to vector<3x256xf32>
    %43 = arith.select %41, %39, %42 : vector<3x256xi1>, vector<3x256xf32>
    %cst_12 = arith.constant 1.000000e+00 : f32
    %44 = vector.broadcast %cst_12 : f32 to vector<1x256xf32>
    %45 = tpu.concatenate %15, %16, %21, %26, %27, %32, %37, %38, %43, %44 in 0 : vector<3x256xf32>, vector<3x256xf32>, vector<3x256xf32>, vector<3x256xf32>, vector<3x256xf32>, vector<3x256xf32>, vector<3x256xf32>, vector<3x256xf32>, vector<3x256xf32>, vector<1x256xf32> -> vector<28x256xf32>
    %c0_13 = arith.constant 0 : index
    %c0_14 = arith.constant 0 : index
    %46 = vector.load %arg5[%c0_13, %c0_14] : memref<64x28xf32, #tpu.memory_space<vmem>>, vector<64x28xf32>
    %cst_15 = arith.constant dense<0.000000e+00> : vector<64x256xf32>
    %47 = tpu.matmul %46, %45, %cst_15 {dimension_numbers = #tpu.dot_dimension_numbers<[1], [0], [0], [1], [0, 0, 1, 1], [], []>} : vector<64x28xf32>, vector<28x256xf32>, vector<64x256xf32> -> vector<64x256xf32>
    %c0_16 = arith.constant 0 : index
    %c0_17 = arith.constant 0 : index
    %c0_18 = arith.constant 0 : index
    %48 = vector.load %arg6[%c0_16, %c0_17, %c0_18] : memref<1x64x256xf32, #tpu.memory_space<vmem>>, vector<1x64x256xf32>
    %49 = vector.shape_cast %48 : vector<1x64x256xf32> to vector<64x256xf32>
    %50 = vector.shape_cast %47 : vector<64x256xf32> to vector<1x64x256xf32>
    tpu.vector_store %arg6[%c0_16, %c0_17, %c0_18], %50 {strides = array<i32>} : memref<1x64x256xf32, #tpu.memory_space<vmem>>, vector<1x64x256xf32>,
    return
  }
  func.func @transform_0(%arg0: i32, %arg1: i32) -> (i32, i32) {
    %c0_i32 = arith.constant 0 : i32
    %c0_i32_0 = arith.constant 0 : i32
    return %c0_i32, %arg1 : i32, i32
  }
  func.func @transform_1(%arg0: i32, %arg1: i32) -> (i32, i32, i32) {
    %c0_i32 = arith.constant 0 : i32
    %c0_i32_0 = arith.constant 0 : i32
    return %arg0, %c0_i32, %arg1 : i32, i32, i32
  }
  func.func @transform_2(%arg0: i32, %arg1: i32) -> (i32, i32, i32) {
    %c1_i32 = arith.constant 1 : i32
    %0 = arith.addi %arg1, %c1_i32 : i32
    %c0_i32 = arith.constant 0 : i32
    %c0_i32_0 = arith.constant 0 : i32
    return %arg0, %c0_i32, %0 : i32, i32, i32
  }
  func.func @transform_3(%arg0: i32, %arg1: i32) -> (i32, i32) {
    %c0_i32 = arith.constant 0 : i32
    %c0_i32_0 = arith.constant 0 : i32
    %c0_i32_1 = arith.constant 0 : i32
    return %c0_i32, %c0_i32_0 : i32, i32
  }
  func.func @transform_4(%arg0: i32, %arg1: i32) -> (i32, i32, i32) {
    %c0_i32 = arith.constant 0 : i32
    %c0_i32_0 = arith.constant 0 : i32
    return %arg0, %c0_i32, %arg1 : i32, i32, i32
  }
}

</mosaic_0001>

<llo_original>
// kernel: conv_functional.1
$region0: #{conv_functional.1}
  #allocation0 [shape = 'u32[]', space=smem, size = 0x4, offset = 0x4, fixed_abs, tag = 'smem constant byte address 0x4 - core index']
  #allocation1 [shape = 'u32[144,128]{1,0:T(1,128)}', space=vmem, size = 0x12000, scoped, tag = 'internal scratch']
  %s0 = inlined_call_operand.vmem [shape: s32[1,256], index: 0, kind: input, shape index: {}]
  %s1 = inlined_call_operand.vmem [shape: f32[2,3,512], index: 1, kind: input, shape index: {}, may-alias: {1,2}]
  %s2 = inlined_call_operand.vmem [shape: f32[2,3,512], index: 2, kind: input, shape index: {}, may-alias: {1,2}]
  %s3 = inlined_call_operand.vmem [shape: f32[64,28], index: 3, kind: input, shape index: {}]
  %s4 = inlined_call_operand.vmem [shape: f32[2,64,256], index: 4, kind: output, shape index: {}]
  %s5 = sld [smem:[#allocation0]]
  $region49: #{conv_functional.1} parent=0
    _
  %s7 = ssub.s32 1, %s5
  %s8 = scalar_select 0, %s7, %s5
  loop: start=0, step=1, limit=4
  $region2: #{conv_functional.1} parent=0 // loop_pre_header
    _
  $region3: #{conv_functional.1} parent=0 // loop_header
    %s10 = sphi 0, %s14
    %p11 = scmp.ge.s32.totalorder %s10, 4
    %s17 = sphi 0, %s29
    %s18 = sphi 0, %s25
    %s19 = sphi 0, %s17
    %s20 = sphi 0, %s18
    %s21 = sphi 0, %s19
    %s22 = sphi 0, %s20
    %s32 = sphi 0, %s34
    %s35 = sphi 0, %s32
    %s36 = sphi 0, %s35
    %s52 = sphi 0, %s36
    %s60 = sphi 0, %s62
    %s63 = sphi 0, %s60
    %s64 = sphi 0, %s63
    %s80 = sphi 0, %s64
    %s90 = sphi 0, %s92
    %s93 = sphi 0, %s90
    %s94 = sphi 0, %s93
    %s110 = sphi 0, %s94
    %s114 = sphi 0, %s114
    %s116 = sphi 0, %s114
    %s117 = sphi 0, %s116
    %s131 = sphi 0, %s117
    %s139 = sphi 0, %s141
    %s142 = sphi 0, %s139
    %s143 = sphi 0, %s142
    %s159 = sphi 0, %s143
  $region4: #{conv_functional.1} parent=0 // loop_header_branch
    %13 = sbr.rel (%p11) target = $region8
  $region5: #{conv_functional.1} parent=0 // loop_body
    %s15 = ssub.s32 %s10, 1
    %s16 = ssub.s32 %s10, 2
    %s23 = sadd.s32 1, %s18
    %p24 = scmp.ge.s32.totalorder %s23, 1
    %s25 = scalar_select %p24, 0, %s23
    %s26 = sadd.s32 1, %s17
    %s27 = scalar_select %p24, %s26, %s17
    %p28 = scmp.ge.s32.totalorder %s27, 2
    %s29 = scalar_select %p28, 0, %s27
    %s30 = ssub.s32 %s18, %s25
    %p31 = scmp.eq.s32.totalorder %s30, 0
    %s33 = sadd.s32 %s32, 1
    %s34 = scalar_select %p31, %s32, %s33
    %p37 = pneg %p31
    %p38 = scmp.eq.s32.totalorder %s10, 1
    %p39 = por %p37, %p38
    %p40 = scmp.ne.s32.totalorder %s32, %s35
    %p41 = scmp.eq.s32.totalorder %s10, 0
    %p42 = por %p40, %p41
    %p43 = scmp.ne.s32.totalorder %s32, %s35
    %p44 = scmp.eq.s32.totalorder %s15, 1
    %p45 = por %p43, %p44
    %p46 = scmp.ne.s32.totalorder %s35, %s36
    %p47 = scmp.eq.s32.totalorder %s15, 0
    %p48 = por %p46, %p47
    %p49 = scmp.ne.s32.totalorder %s35, %s36
    %p50 = scmp.eq.s32.totalorder %s16, 1
    %p51 = por %p49, %p50
    %p53 = scmp.ne.s32.totalorder %s36, %s52
    %p54 = scmp.eq.s32.totalorder %s16, 0
    %p55 = por %p53, %p54
    %s56 = ssub.s32 %s17, %s29
    %s57 = ssub.s32 %s18, %s25
    %s58 = sor.u32 %s56, %s57
    %p59 = scmp.eq.s32.totalorder %s58, 0
    %s61 = sadd.s32 %s60, 1
    %s62 = scalar_select %p59, %s60, %s61
    %p65 = pneg %p59
    %p66 = scmp.eq.s32.totalorder %s10, 1
    %p67 = por %p65, %p66
    %p68 = scmp.ne.s32.totalorder %s60, %s63
    %p69 = scmp.eq.s32.totalorder %s10, 0
    %p70 = por %p68, %p69
    %p71 = scmp.ne.s32.totalorder %s60, %s63
    %p72 = scmp.eq.s32.totalorder %s15, 1
    %p73 = por %p71, %p72
    %p74 = scmp.ne.s32.totalorder %s63, %s64
    %p75 = scmp.eq.s32.totalorder %s15, 0
    %p76 = por %p74, %p75
    %p77 = scmp.ne.s32.totalorder %s63, %s64
    %p78 = scmp.eq.s32.totalorder %s16, 1
    %p79 = por %p77, %p78
    %p81 = scmp.ne.s32.totalorder %s64, %s80
    %p82 = scmp.eq.s32.totalorder %s16, 0
    %p83 = por %p81, %p82
    %s84 = sadd.s32 %s18, 1
    %s85 = sadd.s32 %s25, 1
    %s86 = ssub.s32 %s17, %s29
    %s87 = ssub.s32 %s84, %s85
    %s88 = sor.u32 %s86, %s87
    %p89 = scmp.eq.s32.totalorder %s88, 0
    %s91 = sadd.s32 %s90, 1
    %s92 = scalar_select %p89, %s90, %s91
    %p95 = pneg %p89
    %p96 = scmp.eq.s32.totalorder %s10, 1
    %p97 = por %p95, %p96
    %p98 = scmp.ne.s32.totalorder %s90, %s93
    %p99 = scmp.eq.s32.totalorder %s10, 0
    %p100 = por %p98, %p99
    %p101 = scmp.ne.s32.totalorder %s90, %s93
    %p102 = scmp.eq.s32.totalorder %s15, 1
    %p103 = por %p101, %p102
    %p104 = scmp.ne.s32.totalorder %s93, %s94
    %p105 = scmp.eq.s32.totalorder %s15, 0
    %p106 = por %p104, %p105
    %p107 = scmp.ne.s32.totalorder %s93, %s94
    %p108 = scmp.eq.s32.totalorder %s16, 1
    %p109 = por %p107, %p108
    %p111 = scmp.ne.s32.totalorder %s94, %s110
    %p112 = scmp.eq.s32.totalorder %s16, 0
    %p113 = por %p111, %p112
    %s115 = sadd.s32 %s114, 1
    %p118 = scmp.eq.s32.totalorder %s10, 1
    %p119 = scmp.ne.s32.totalorder %s114, %s116
    %p120 = scmp.eq.s32.totalorder %s10, 0
    %p121 = por %p119, %p120
    %p122 = scmp.ne.s32.totalorder %s114, %s116
    %p123 = scmp.eq.s32.totalorder %s15, 1
    %p124 = por %p122, %p123
    %p125 = scmp.ne.s32.totalorder %s116, %s117
    %p126 = scmp.eq.s32.totalorder %s15, 0
    %p127 = por %p125, %p126
    %p128 = scmp.ne.s32.totalorder %s116, %s117
    %p129 = scmp.eq.s32.totalorder %s16, 1
    %p130 = por %p128, %p129
    %p132 = scmp.ne.s32.totalorder %s117, %s131
    %p133 = scmp.eq.s32.totalorder %s16, 0
    %p134 = por %p132, %p133
    %s135 = ssub.s32 %s17, %s29
    %s136 = ssub.s32 %s18, %s25
    %s137 = sor.u32 %s135, %s136
    %p138 = scmp.eq.s32.totalorder %s137, 0
    %s140 = sadd.s32 %s139, 1
    %s141 = scalar_select %p138, %s139, %s140
    %p144 = pneg %p138
    %p145 = scmp.eq.s32.totalorder %s10, 1
    %p146 = por %p144, %p145
    %p147 = scmp.ne.s32.totalorder %s139, %s142
    %p148 = scmp.eq.s32.totalorder %s10, 0
    %p149 = por %p147, %p148
    %p150 = scmp.ne.s32.totalorder %s139, %s142
    %p151 = scmp.eq.s32.totalorder %s15, 1
    %p152 = por %p150, %p151
    %p153 = scmp.ne.s32.totalorder %s142, %s143
    %p154 = scmp.eq.s32.totalorder %s15, 0
    %p155 = por %p153, %p154
    %p156 = scmp.ne.s32.totalorder %s142, %s143
    %p157 = scmp.eq.s32.totalorder %s16, 1
    %p158 = por %p156, %p157
    %p160 = scmp.ne.s32.totalorder %s143, %s159
    %p161 = scmp.eq.s32.totalorder %s16, 0
    %p162 = por %p160, %p161
    %p163 = scmp.le.s32.totalorder 1, %s10
    %p164 = scmp.lt.s32.totalorder %s10, 3
    %p165 = pnand %p163, %p164
    %p166 = pneg %p165
    // Predicated region
    $region9: #{conv_functional.1} parent=5 // pred_check
      _
    $region10: #{conv_functional.1} parent=5 // pred_check_branch
      %168 = sbr.rel (%p165) target = $region12
    $region11: #{conv_functional.1} parent=5 // pred_region
      %s169 = ssub.s32 %s10, 1
      // Predicated region
      $region13: #{conv_functional.1} parent=11 // pred_check
        %p170 = pneg %p48
      $region14: #{conv_functional.1} parent=11 // pred_check_branch
        %172 = sbr.rel (%p170) target = $region16
      $region15: #{conv_functional.1} parent=11 // pred_region
        %s173 = smul.u32 2, %s20
        %p174 = scmp.lt.s32.totalorder %s173, 1
        %s175 = scalar_select %p174, %s173, 1
        %s176 = scalar_lea.vmem %s0, %s175
        %s177 = smul.u32 2, %s20
      $region16: #{conv_functional.1} parent=11 // pred_fallthru
        _
      // Predicated region
      $region17: #{conv_functional.1} parent=11 // pred_check
        %p178 = pneg %p127
      $region18: #{conv_functional.1} parent=11 // pred_check_branch
        %180 = sbr.rel (%p178) target = $region20
      $region19: #{conv_functional.1} parent=11 // pred_region
        _
      $region20: #{conv_functional.1} parent=11 // pred_fallthru
        _
    $region12: #{conv_functional.1} parent=5 // pred_fallthru
      _
    %p181 = scmp.lt.s32.totalorder %s10, 2
    // Predicated region
    $region21: #{conv_functional.1} parent=5 // pred_check
      %p182 = pneg %p181
    $region22: #{conv_functional.1} parent=5 // pred_check_branch
      %184 = sbr.rel (%p182) target = $region24
    $region23: #{conv_functional.1} parent=5 // pred_region
      // Predicated region
      $region25: #{conv_functional.1} parent=23 // pred_check
        %p185 = pneg %p70
      $region26: #{conv_functional.1} parent=23 // pred_check_branch
        %187 = sbr.rel (%p185) target = $region28
      $region27: #{conv_functional.1} parent=23 // pred_region
        %s188 = smul.u32 2, %s18
        %p189 = scmp.lt.s32.totalorder %s17, 1
        %s190 = scalar_select %p189, %s17, 1
        %p191 = scmp.lt.s32.totalorder %s188, 3
        %s192 = scalar_select %p191, %s188, 3
        %s193 = smul.addr %s190, 4
        %s194 = sadd.s32 %s192, %s193
        %s195 = smul.addr %s194, 4
        %s196 = scalar_lea.vmem %s1, %s195
        %s197 = smul.u32 2, %s18
      $region28: #{conv_functional.1} parent=23 // pred_fallthru
        _
      // Predicated region
      $region29: #{conv_functional.1} parent=23 // pred_check
        %p198 = pneg %p100
      $region30: #{conv_functional.1} parent=23 // pred_check_branch
        %200 = sbr.rel (%p198) target = $region32
      $region31: #{conv_functional.1} parent=23 // pred_region
        %s201 = sadd.s32 %s18, 1
        %s202 = smul.u32 2, %s201
        %p203 = scmp.lt.s32.totalorder %s17, 1
        %s204 = scalar_select %p203, %s17, 1
        %p205 = scmp.lt.s32.totalorder %s202, 3
        %s206 = scalar_select %p205, %s202, 3
        %s207 = smul.addr %s204, 4
        %s208 = sadd.s32 %s206, %s207
        %s209 = smul.addr %s208, 4
        %s210 = scalar_lea.vmem %s2, %s209
        %s211 = sadd.s32 %s18, 1
        %s212 = smul.u32 2, %s211
      $region32: #{conv_functional.1} parent=23 // pred_fallthru
        _
    $region24: #{conv_functional.1} parent=5 // pred_fallthru
      _
    %p213 = scmp.le.s32.totalorder 1, %s10
    %p214 = scmp.lt.s32.totalorder %s10, 3
    %p215 = pnand %p213, %p214
    %p216 = pneg %p215
    // Predicated region
    $region33: #{conv_functional.1} parent=5 // pred_check
      _
    $region34: #{conv_functional.1} parent=5 // pred_check_branch
      %218 = sbr.rel (%p215) target = $region36
    $region35: #{conv_functional.1} parent=5 // pred_region
      %s219 = ssub.s32 %s10, 1
      %s220 = smul.u32 2, %s20
      %p221 = scmp.lt.s32.totalorder %s220, 1
      %s222 = scalar_select %p221, %s220, 1
      %s223 = scalar_lea.vmem %s0, %s222
      %p224 = pneg %p48
      %p225 = pneg %p45
      %s226 = smul.u32 2, %s20
      %p227 = scmp.lt.s32.totalorder %s19, 1
      %s228 = scalar_select %p227, %s19, 1
      %p229 = scmp.lt.s32.totalorder %s226, 3
      %s230 = scalar_select %p229, %s226, 3
      %s231 = smul.addr %s228, 4
      %s232 = sadd.s32 %s230, %s231
      %s233 = smul.addr %s232, 4
      %s234 = scalar_lea.vmem %s1, %s233
      %p235 = pneg %p76
      %p236 = pneg %p73
      %s237 = sadd.s32 %s20, 1
      %s238 = smul.u32 2, %s237
      %p239 = scmp.lt.s32.totalorder %s19, 1
      %s240 = scalar_select %p239, %s19, 1
      %p241 = scmp.lt.s32.totalorder %s238, 3
      %s242 = scalar_select %p241, %s238, 3
      %s243 = smul.addr %s240, 4
      %s244 = sadd.s32 %s242, %s243
      %s245 = smul.addr %s244, 4
      %s246 = scalar_lea.vmem %s2, %s245
      %p247 = pneg %p106
      %p248 = pneg %p103
      %p249 = pneg %p127
      %p250 = pneg %p124
      %p251 = pneg %p155
      %p252 = pneg %p152
      %s253 = smul.u32 2, %s20
      %p254 = scmp.lt.s32.totalorder %s19, 1
      %s255 = scalar_select %p254, %s19, 1
      %p256 = scmp.lt.s32.totalorder %s253, 1
      %s257 = scalar_select %p256, %s253, 1
      %s258 = smul.addr %s255, 16
      %s259 = sadd.s32 %s257, %s258
      %s260 = smul.addr %s259, 8
      %s261 = scalar_lea.vmem %s4, %s260
      %s262 = smul.u32 2, %s20
      %p263 = scmp.lt.s32.totalorder %s262, 1
      %s264 = scalar_select %p263, %s262, 1
      %s265 = scalar_lea.vmem %s0, %s264
      %s266 = smul.u32 2, %s20
      %s267 = smul.u32 2, %s20
      %p268 = scmp.lt.s32.totalorder %s19, 1
      %s269 = scalar_select %p268, %s19, 1
      %p270 = scmp.lt.s32.totalorder %s267, 3
      %s271 = scalar_select %p270, %s267, 3
      %s272 = smul.addr %s269, 4
      %s273 = sadd.s32 %s271, %s272
      %s274 = smul.addr %s273, 4
      %s275 = scalar_lea.vmem %s1, %s274
      %s276 = smul.u32 2, %s20
      %s277 = sadd.s32 %s20, 1
      %s278 = smul.u32 2, %s277
      %p279 = scmp.lt.s32.totalorder %s19, 1
      %s280 = scalar_select %p279, %s19, 1
      %p281 = scmp.lt.s32.totalorder %s278, 3
      %s282 = scalar_select %p281, %s278, 3
      %s283 = smul.addr %s280, 4
      %s284 = sadd.s32 %s282, %s283
      %s285 = smul.addr %s284, 4
      %s286 = scalar_lea.vmem %s2, %s285
      %s287 = sadd.s32 %s20, 1
      %s288 = smul.u32 2, %s287
      %s289 = smul.u32 2, %s20
      %p290 = scmp.lt.s32.totalorder %s19, 1
      %s291 = scalar_select %p290, %s19, 1
      %p292 = scmp.lt.s32.totalorder %s289, 1
      %s293 = scalar_select %p292, %s289, 1
      %s294 = smul.addr %s291, 16
      %s295 = sadd.s32 %s293, %s294
      %s296 = smul.addr %s295, 8
      %s297 = scalar_lea.vmem %s4, %s296
      %s298 = smul.u32 2, %s20
      %v299 = vld [vmem:[%s275] sm:$0x77]
      %v300 = vld [vmem:[%s286] sm:$0x77]
      %v302 = vcombine.high %v299, %v299
      %v304 = vld [vmem:[%s265] sm:$0x3]
      %vm305 = vcmp.ne.s32.totalorder %v304, 0
      %vm306 = vcmp.ne.s32.totalorder %v304, 15
      %v307 = vsel %vm305, 1, 0
      %v308 = vlaneseq
      %v309 = vshrl.u32 %v308, 7
      %v310 = vsub.s32 0, %v309
      %v311 = vrot.slane %v307, %v310
      %v312 = vlaneseq
      %v313 = vshrl.u32 %v312, 7
      %v314 = vsub.s32 1, %v313
      %v315 = vrot.slane %v307, %v314
      %vm316 = vcmp.eq.s32.totalorder %v311, 1
      %vm317 = vcmp.eq.s32.totalorder %v315, 1
      %v318 = vsel %vm316, %v299, 0.0
      %v319 = vsel %vm317, %v302, 0.0
      %v320 = vsel %vm306, 1, 0
      %v321 = vlaneseq
      %v322 = vshrl.u32 %v321, 7
      %v323 = vsub.s32 0, %v322
      %v324 = vrot.slane %v320, %v323
      %v325 = vlaneseq
      %v326 = vshrl.u32 %v325, 7
      %v327 = vsub.s32 1, %v326
      %v328 = vrot.slane %v320, %v327
      %vm329 = vcmp.eq.s32.totalorder %v324, 1
      %vm330 = vcmp.eq.s32.totalorder %v328, 1
      %332 = vrot.lane.b32.xlu0 %v299, 126
      %v333 = vpop.permute.xlu0 %332
      %334 = vrot.lane.b32.xlu0 %v302, 126
      %v335 = vpop.permute.xlu0 %334
      %336 = vrot.lane.b32.xlu0 %v300, 126
      %v337 = vpop.permute.xlu0 %336
      %vm338 = vcmask 1031168
      %v339 = vsel %vm338, %v333, %v335
      %v340 = vsel %vm338, %v335, %v337
      %v343 = vsel %vm329, %v339, 0.0
      %v344 = vsel %vm330, %v340, 0.0
      %345 = vrot.lane.b32.xlu0 %v299, 112
      %v346 = vpop.permute.xlu0 %345
      %347 = vrot.lane.b32.xlu0 %v302, 112
      %v348 = vpop.permute.xlu0 %347
      %349 = vrot.lane.b32.xlu0 %v300, 112
      %v350 = vpop.permute.xlu0 %349
      %vm351 = vcmask 916480
      %v352 = vsel %vm351, %v346, %v348
      %v353 = vsel %vm351, %v348, %v350
      %v356 = vsel %vm316, %v352, 0.0
      %v357 = vsel %vm317, %v353, 0.0
      %358 = vrot.lane.b32.xlu0 %v299, 110
      %v359 = vpop.permute.xlu0 %358
      %360 = vrot.lane.b32.xlu0 %v302, 110
      %v361 = vpop.permute.xlu0 %360
      %362 = vrot.lane.b32.xlu0 %v300, 110
      %v363 = vpop.permute.xlu0 %362
      %vm364 = vcmask 900096
      %v365 = vsel %vm364, %v359, %v361
      %v366 = vsel %vm364, %v361, %v363
      %v369 = vsel %vm329, %v365, 0.0
      %v370 = vsel %vm330, %v366, 0.0
      %371 = vrot.lane.b32.xlu0 %v299, 96
      %v372 = vpop.permute.xlu0 %371
      %373 = vrot.lane.b32.xlu0 %v302, 96
      %v374 = vpop.permute.xlu0 %373
      %375 = vrot.lane.b32.xlu0 %v300, 96
      %v376 = vpop.permute.xlu0 %375
      %vm377 = vcmask 785408
      %v378 = vsel %vm377, %v372, %v374
      %v379 = vsel %vm377, %v374, %v376
      %v382 = vsel %vm316, %v378, 0.0
      %v383 = vsel %vm317, %v379, 0.0
      %384 = vrot.lane.b32.xlu0 %v299, 94
      %v385 = vpop.permute.xlu0 %384
      %386 = vrot.lane.b32.xlu0 %v302, 94
      %v387 = vpop.permute.xlu0 %386
      %388 = vrot.lane.b32.xlu0 %v300, 94
      %v389 = vpop.permute.xlu0 %388
      %vm390 = vcmask 769024
      %v391 = vsel %vm390, %v385, %v387
      %v392 = vsel %vm390, %v387, %v389
      %v395 = vsel %vm329, %v391, 0.0
      %v396 = vsel %vm330, %v392, 0.0
      %v397 = vrot.slane %v299, 5
      %v398 = vrot.slane %v302, 5
      %v399 = vrot.slane %v300, 5
      %400 = vrot.lane.b32.xlu0 %v397, 127
      %v401 = vpop.permute.xlu0 %400
      %402 = vrot.lane.b32.xlu0 %v398, 127
      %v403 = vpop.permute.xlu0 %402
      %404 = vrot.lane.b32.xlu0 %v399, 127
      %v405 = vpop.permute.xlu0 %404
      %vm406 = vcmask 1039360
      %v407 = vsel %vm406, %v401, %v403
      %v408 = vsel %vm406, %v403, %v405
      %v413 = vrot.slane %v343, 2
      %v414 = vrot.slane %v344, 2
      %v419 = vrot.slane %v356, 7
      %v420 = vrot.slane %v357, 7
      %v423 = vrot.slane %v299, 4
      %v424 = vrot.slane %v302, 4
      %v425 = vrot.slane %v300, 4
      %426 = vrot.lane.b32.xlu0 %v423, 111
      %v427 = vpop.permute.xlu0 %426
      %428 = vrot.lane.b32.xlu0 %v424, 111
      %v429 = vpop.permute.xlu0 %428
      %430 = vrot.lane.b32.xlu0 %v425, 111
      %v431 = vpop.permute.xlu0 %430
      %vm432 = vcmask 908288
      %v433 = vsel %vm432, %v427, %v429
      %v434 = vsel %vm432, %v429, %v431
      %v439 = vrot.slane %v369, 1
      %v440 = vrot.slane %v370, 1
      %v445 = vrot.slane %v382, 6
      %v446 = vrot.slane %v383, 6
      %v449 = vrot.slane %v299, 3
      %v450 = vrot.slane %v302, 3
      %v451 = vrot.slane %v300, 3
      %452 = vrot.lane.b32.xlu0 %v449, 95
      %v453 = vpop.permute.xlu0 %452
      %454 = vrot.lane.b32.xlu0 %v450, 95
      %v455 = vpop.permute.xlu0 %454
      %456 = vrot.lane.b32.xlu0 %v451, 95
      %v457 = vpop.permute.xlu0 %456
      %vm458 = vcmask 777216
      %v459 = vsel %vm458, %v453, %v455
      %v460 = vsel %vm458, %v455, %v457
      %vm463 = vcmask 1042432
      %v464 = vsel %vm463, %v318, %v407
      %v465 = vsel %vm463, %v319, %v408
      %vm466 = vcmask 1045504
      %v467 = vsel %vm466, %v464, %v413
      %v468 = vsel %vm466, %v465, %v414
      %vm469 = vcmask 1040384
      %v470 = vsel %vm469, %v413, %v419
      %v471 = vsel %vm469, %v414, %v420
      %vm472 = vcmask 1043456
      %v473 = vsel %vm472, %v470, %v433
      %v474 = vsel %vm472, %v471, %v434
      %vm475 = vcmask 1046528
      %v476 = vsel %vm475, %v473, %v439
      %v477 = vsel %vm475, %v474, %v440
      %vm478 = vcmask 1041408
      %v479 = vsel %vm478, %v439, %v445
      %v480 = vsel %vm478, %v440, %v446
      %vm481 = vcmask 1044480
      %v482 = vsel %vm481, %v479, %v459
      %v483 = vsel %vm481, %v480, %v460
      %v484 = vsel %vm463, %v395, 1.0
      %v485 = vsel %vm463, %v396, 1.0
      %v486 = vld [vmem:[%s3] sm:$0xff]
      %v487 = vld [vmem:[%s3 + $0x8] sm:$0xff]
      %v488 = vld [vmem:[%s3 + $0x10] sm:$0xff]
      %v489 = vld [vmem:[%s3 + $0x18] sm:$0xff]
      %v490 = vld [vmem:[%s3 + $0x20] sm:$0xff]
      %v491 = vld [vmem:[%s3 + $0x28] sm:$0xff]
      %v492 = vld [vmem:[%s3 + $0x30] sm:$0xff]
      %v493 = vld [vmem:[%s3 + $0x38] sm:$0xff]
      %vm494 = vcmask 228352
      %v496 = vsel %vm494, %v486, 0
      %v499 = vsel %vm494, %v487, 0
      %v502 = vsel %vm494, %v488, 0
      %v505 = vsel %vm494, %v489, 0
      %v508 = vsel %vm494, %v490, 0
      %v511 = vsel %vm494, %v491, 0
      %v514 = vsel %vm494, %v492, 0
      %v517 = vsel %vm494, %v493, 0
      %v520 = vsel %vm472, %v484, 0
      %v523 = vsel %vm472, %v485, 0
      %525 = vmatprep.subr.mxu0 %v468
      %526 = vmatpush1.msra.mxu0 %v467
      %527 = vmatprep.subr.mxu0 %v477
      %528 = vmatpush1.msra.mxu0 %v476
      %529 = vmatprep.subr.mxu0 %v483
      %530 = vmatpush1.msra.mxu0 %v482
      %531 = vmatprep.subr.mxu0 %v523
      %532 = vmatpush1.msra.mxu0 %v520
      %533 = vmatprep.subr.mxu0 0.0
      %534 = vmatpush1.msra.mxu0 0.0
      %535 = vmatprep.subr.mxu0 0.0
      %536 = vmatpush1.msra.mxu0 0.0
      %537 = vmatprep.subr.mxu0 0.0
      %538 = vmatpush1.msra.mxu0 0.0
      %539 = vmatprep.subr.mxu0 0.0
      %540 = vmatpush1.msra.mxu0 0.0
      %541 = vmatprep.subr.mxu0 0.0
      %542 = vmatpush1.msra.mxu0 0.0
      %543 = vmatprep.subr.mxu0 0.0
      %544 = vmatpush1.msra.mxu0 0.0
      %545 = vmatprep.subr.mxu0 0.0
      %546 = vmatpush1.msra.mxu0 0.0
      %547 = vmatprep.subr.mxu0 0.0
      %548 = vmatpush1.msra.mxu0 0.0
      %549 = vmatprep.subr.mxu0 0.0
      %550 = vmatpush1.msra.mxu0 0.0
      %551 = vmatprep.subr.mxu0 0.0
      %552 = vmatpush1.msra.mxu0 0.0
      %553 = vmatprep.subr.mxu0 0.0
      %554 = vmatpush1.msra.mxu0 0.0
      %555 = vmatprep.subr.mxu0 0.0
      %556 = vmatpush1.msra.mxu0 0.0
      %557 = vmatprep.subr.mxu0 0.0
      %558 = vmatpush1.msra.mxu0 0.0
      %559 = vmatprep.subr.mxu0 0.0
      %560 = vmatpush1.msra.mxu0 0.0
      %561 = vmatprep.subr.mxu0 0.0
      %562 = vmatpush1.msra.mxu0 0.0
      %563 = vmatprep.subr.mxu0 0.0
      %564 = vmatpush1.msra.mxu0 0.0
      %565 = vmatprep.subr.mxu0 0.0
      %566 = vmatpush1.msra.mxu0 0.0
      %567 = vmatprep.subr.mxu0 0.0
      %568 = vmatpush1.msra.mxu0 0.0
      %569 = vmatprep.subr.mxu0 0.0
      %570 = vmatpush1.msra.mxu0 0.0
      %571 = vmatprep.subr.mxu0 0.0
      %572 = vmatpush1.msra.mxu0 0.0
      %573 = vmatprep.subr.mxu0 0.0
      %574 = vmatpush1.msra.mxu0 0.0
      %575 = vmatprep.subr.mxu0 0.0
      %576 = vmatpush1.msra.mxu0 0.0
      %577 = vmatprep.subr.mxu0 0.0
      %578 = vmatpush1.msra.mxu0 0.0
      %579 = vmatprep.subr.mxu0 0.0
      %580 = vmatpush1.msra.mxu0 0.0
      %581 = vmatprep.subr.mxu0 0.0
      %582 = vmatpush1.msra.mxu0 0.0
      %583 = vmatprep.subr.mxu0 0.0
      %584 = vmatpush1.msra.mxu0 0.0
      %585 = vmatprep.subr.mxu0 0.0
      %586 = vmatpush1.msra.mxu0 0.0
      %587 = vmatprep.subr.mxu0 0.0
      %588 = vmatpush1.msra.mxu0 0.0
      %589 = vmatprep.mubr.f32.mxu0 0.0
      %590 = vmatmul.mubr.f32.gmra.mrb[0].mxu0 %v496
      %v591 = vpop.f32.mrb[0].mxu0
      %v592 = vadd.f32 0.0, %v591
      %v593 = vpop.f32.mrb[0].mxu0
      %v594 = vadd.f32 0.0, %v593
      %595 = vmatprep.mubr.f32.mxu0 0.0
      %596 = vmatmul.mubr.f32.gmra.mrb[0].mxu0 %v499
      %v597 = vpop.f32.mrb[0].mxu0
      %v598 = vadd.f32 0.0, %v597
      %v599 = vpop.f32.mrb[0].mxu0
      %v600 = vadd.f32 0.0, %v599
      %601 = vmatprep.mubr.f32.mxu0 0.0
      %602 = vmatmul.mubr.f32.gmra.mrb[0].mxu0 %v502
      %v603 = vpop.f32.mrb[0].mxu0
      %v604 = vadd.f32 0.0, %v603
      %v605 = vpop.f32.mrb[0].mxu0
      %v606 = vadd.f32 0.0, %v605
      %607 = vmatprep.mubr.f32.mxu0 0.0
      %608 = vmatmul.mubr.f32.gmra.mrb[0].mxu0 %v505
      %v609 = vpop.f32.mrb[0].mxu0
      %v610 = vadd.f32 0.0, %v609
      %v611 = vpop.f32.mrb[0].mxu0
      %v612 = vadd.f32 0.0, %v611
      %613 = vmatprep.mubr.f32.mxu0 0.0
      %614 = vmatmul.mubr.f32.gmra.mrb[0].mxu0 %v508
      %v615 = vpop.f32.mrb[0].mxu0
      %v616 = vadd.f32 0.0, %v615
      %v617 = vpop.f32.mrb[0].mxu0
      %v618 = vadd.f32 0.0, %v617
      %619 = vmatprep.mubr.f32.mxu0 0.0
      %620 = vmatmul.mubr.f32.gmra.mrb[0].mxu0 %v511
      %v621 = vpop.f32.mrb[0].mxu0
      %v622 = vadd.f32 0.0, %v621
      %v623 = vpop.f32.mrb[0].mxu0
      %v624 = vadd.f32 0.0, %v623
      %625 = vmatprep.mubr.f32.mxu0 0.0
      %626 = vmatmul.mubr.f32.gmra.mrb[0].mxu0 %v514
      %v627 = vpop.f32.mrb[0].mxu0
      %v628 = vadd.f32 0.0, %v627
      %v629 = vpop.f32.mrb[0].mxu0
      %v630 = vadd.f32 0.0, %v629
      %631 = vmatprep.mubr.f32.mxu0 0.0
      %632 = vmatmul.mubr.f32.gmra.mrb[0].mxu0 %v517
      %v633 = vpop.f32.mrb[0].mxu0
      %v634 = vadd.f32 0.0, %v633
      %v635 = vpop.f32.mrb[0].mxu0
      %v636 = vadd.f32 0.0, %v635
      %637 = vdwg.mxu0
      %638 = vst [vmem:[%s297] sm:$0xff] %v592
      %639 = vst [vmem:[%s297 + $0x8] sm:$0xff] %v594
      %640 = vst [vmem:[%s297 + $0x10] sm:$0xff] %v598
      %641 = vst [vmem:[%s297 + $0x18] sm:$0xff] %v600
      %642 = vst [vmem:[%s297 + $0x20] sm:$0xff] %v604
      %643 = vst [vmem:[%s297 + $0x28] sm:$0xff] %v606
      %644 = vst [vmem:[%s297 + $0x30] sm:$0xff] %v610
      %645 = vst [vmem:[%s297 + $0x38] sm:$0xff] %v612
      %646 = vst [vmem:[%s297 + $0x40] sm:$0xff] %v616
      %647 = vst [vmem:[%s297 + $0x48] sm:$0xff] %v618
      %648 = vst [vmem:[%s297 + $0x50] sm:$0xff] %v622
      %649 = vst [vmem:[%s297 + $0x58] sm:$0xff] %v624
      %650 = vst [vmem:[%s297 + $0x60] sm:$0xff] %v628
      %651 = vst [vmem:[%s297 + $0x68] sm:$0xff] %v630
      %652 = vst [vmem:[%s297 + $0x70] sm:$0xff] %v634
      %653 = vst [vmem:[%s297 + $0x78] sm:$0xff] %v636
      %s654 = smul.u32 2, %s20
      %p655 = scmp.lt.s32.totalorder %s19, 1
      %s656 = scalar_select %p655, %s19, 1
      %p657 = scmp.lt.s32.totalorder %s654, 1
      %s658 = scalar_select %p657, %s654, 1
      %s659 = smul.addr %s656, 16
      %s660 = sadd.s32 %s658, %s659
      %s661 = smul.addr %s660, 8
      %s662 = scalar_lea.vmem %s4, %s661
      // Predicated region
      $region37: #{conv_functional.1} parent=35 // pred_check
        %p663 = pneg %p152
      $region38: #{conv_functional.1} parent=35 // pred_check_branch
        %665 = sbr.rel (%p663) target = $region40
      $region39: #{conv_functional.1} parent=35 // pred_region
        %s666 = smul.u32 2, %s20
      $region40: #{conv_functional.1} parent=35 // pred_fallthru
        _
    $region36: #{conv_functional.1} parent=5 // pred_fallthru
      _
    %p667 = scmp.le.s32.totalorder 2, %s10
    // Predicated region
    $region41: #{conv_functional.1} parent=5 // pred_check
      %p668 = pneg %p667
    $region42: #{conv_functional.1} parent=5 // pred_check_branch
      %670 = sbr.rel (%p668) target = $region44
    $region43: #{conv_functional.1} parent=5 // pred_region
      %s671 = ssub.s32 %s10, 2
      // Predicated region
      $region45: #{conv_functional.1} parent=43 // pred_check
        %p672 = pneg %p158
      $region46: #{conv_functional.1} parent=43 // pred_check_branch
        %674 = sbr.rel (%p672) target = $region48
      $region47: #{conv_functional.1} parent=43 // pred_region
        %s675 = smul.u32 2, %s22
        %p676 = scmp.lt.s32.totalorder %s21, 1
        %s677 = scalar_select %p676, %s21, 1
        %p678 = scmp.lt.s32.totalorder %s675, 1
        %s679 = scalar_select %p678, %s675, 1
        %s680 = smul.addr %s677, 16
        %s681 = sadd.s32 %s679, %s680
        %s682 = smul.addr %s681, 8
        %s683 = scalar_lea.vmem %s4, %s682
      $region48: #{conv_functional.1} parent=43 // pred_fallthru
        _
    $region44: #{conv_functional.1} parent=5 // pred_fallthru
      _
  $region6: #{conv_functional.1} parent=0 // loop_footer
    %s14 = sadd.s32 1, %s10
  $region7: #{conv_functional.1} parent=0 // loop_footer_branch
    %9 = sbr.rel target = $region3
  $region8: #{conv_functional.1} parent=0 // loop_exit
    _

</llo_original>
